<compile_context>
chip_gen: v7x
topology: tpu7x:2x2x1
jax: 0.10.0
libtpu: 0.0.40
codegen_flags: <defaults>
</compile_context>

<pallas_src>
import functools

import jax
import jax.numpy as jnp
from jax.experimental import pallas as pl
from jax.experimental.pallas import tpu as pltpu


# ----------------------------------------------------------------------------
# Kernel: step-0 stats phase, then per-tile normalize -> add -> matmul
# ----------------------------------------------------------------------------
def _fused_bn_add_conv_kernel(x9_ref, x5_ref, gamma_ref, beta_ref, w_ref,
                              o_ref, scale_ref, shift_ref, *, eps, tm):
    i = pl.program_id(0)

    # Phase gate: batch statistics over the full, VMEM-resident x9 (C, M).
    # Two-pass (centered) variance for numerical safety; folded into
    # per-channel scale/shift so the per-tile work is a single FMA + add.
    @pl.when(i == 0)
    def _():
        x = x9_ref[...]                                       # (C, M) f32
        inv_m = 1.0 / x.shape[1]
        mean = jnp.sum(x, axis=1, keepdims=True) * inv_m      # (C, 1)
        centered = x - mean
        var = jnp.sum(centered * centered, axis=1, keepdims=True) * inv_m
        scale = gamma_ref[...] * jax.lax.rsqrt(var + eps)     # (C, 1)
        scale_ref[...] = scale
        shift_ref[...] = beta_ref[...] - mean * scale

    off = i * tm
    if tm % 128 == 0:
        off = pl.multiple_of(off, 128)
    x_tile = x9_ref[:, pl.ds(off, tm)]                        # (C, tm)
    y = x_tile * scale_ref[...] + shift_ref[...] + x5_ref[...]

    # 1x1 conv == (Cout, C) @ (C, tm) matmul on the MXU, lane-dense output.
    o_ref[...] = jnp.dot(
        w_ref[...], y, preferred_element_type=jnp.float32
    ).astype(o_ref.dtype)


def _pick_tile(m_total, c_out, max_out_tile_bytes):
    """Largest multiple-of-128 divisor of M whose f32 output tile fits budget."""
    if m_total % 128 != 0:
        return m_total                      # degenerate: one full-width tile
    lanes = m_total // 128
    best = 128
    for d in range(2, lanes + 1):
        if lanes % d == 0:
            tm = 128 * d
            if c_out * tm * 4 <= max_out_tile_bytes:
                best = tm
    return best


# ----------------------------------------------------------------------------
# Wrapper
# ----------------------------------------------------------------------------
@functools.partial(jax.jit, static_argnames=("eps", "max_out_tile_bytes"))
def bn_add_conv1x1(x9_nchw, x5_nchw, gamma, beta, conv_w, eps=1e-3,
                   max_out_tile_bytes=1 << 20):
    N, C, H, W = x9_nchw.shape
    Cout = conv_w.shape[0]
    M = N * H * W

    # NCHW -> (C, M).  For N == 1 this is a pure reshape (no data movement).
    x9_cm = jnp.moveaxis(x9_nchw, 1, 0).reshape(C, M).astype(jnp.float32)
    x5_cm = jnp.moveaxis(x5_nchw, 1, 0).reshape(C, M).astype(jnp.float32)

    g = gamma.reshape(C, 1).astype(jnp.float32)
    b = beta.reshape(C, 1).astype(jnp.float32)
    w2d = conv_w.reshape(Cout, C).astype(jnp.float32)         # (Cout, Cin)

    tm = _pick_tile(M, Cout, max_out_tile_bytes)
    n_tiles = M // tm

    kernel = functools.partial(_fused_bn_add_conv_kernel, eps=eps, tm=tm)

    out_cm = pl.pallas_call(
        kernel,
        out_shape=jax.ShapeDtypeStruct((Cout, M), jnp.float32),
        grid_spec=pltpu.PrefetchScalarGridSpec(
            num_scalar_prefetch=0,
            grid=(n_tiles,),
            in_specs=[
                pl.BlockSpec((C, M), lambda i: (0, 0)),       # x9: resident
                pl.BlockSpec((C, tm), lambda i: (0, i)),      # x5: per tile
                pl.BlockSpec((C, 1), lambda i: (0, 0)),       # gamma
                pl.BlockSpec((C, 1), lambda i: (0, 0)),       # beta
                pl.BlockSpec((Cout, C), lambda i: (0, 0)),    # conv weight
            ],
            out_specs=pl.BlockSpec((Cout, tm), lambda i: (0, i)),
            scratch_shapes=[
                pltpu.VMEM((C, 1), jnp.float32),              # scale
                pltpu.VMEM((C, 1), jnp.float32),              # shift
            ],
        ),
        compiler_params=pltpu.CompilerParams(
            # Steps share the step-0 scale/shift scratch => sequential.
            dimension_semantics=("arbitrary",),
        ),
    )(x9_cm, x5_cm, g, b, w2d)

    # (Cout, M) -> (N, Cout, H, W); pure reshape for N == 1.
    return jnp.moveaxis(out_cm.reshape(Cout, N, H, W), 1, 0)


# ----------------------------------------------------------------------------
# Pure-JAX reference (same math path) for correctness check
# ----------------------------------------------------------------------------
def reference(x9_nchw, x5_nchw, gamma, beta, conv_w, eps=1e-3):
    mean = jnp.mean(x9_nchw, axis=(0, 2, 3), keepdims=True)
    var = jnp.mean((x9_nchw - mean) ** 2, axis=(0, 2, 3), keepdims=True)
    g = gamma.reshape(1, -1, 1, 1)
    b = beta.reshape(1, -1, 1, 1)
    x10 = (x9_nchw - mean) * jax.lax.rsqrt(var + eps) * g + b
    x11 = x10 + x5_nchw
    return jax.lax.conv_general_dilated(
        x11, conv_w, window_strides=(1, 1), padding="VALID",
        dimension_numbers=("NCHW", "OIHW", "NCHW"),
    )


if __name__ == "__main__":
    key = jax.random.PRNGKey(0)
    k1, k2, k3, k4, k5 = jax.random.split(key, 5)

    # Small shapes consistent with the module: N=1, Cin=16, Cout=64, 32x32
    # spatial (module's real size is 112x112; the kernel handles both).
    N, C, H, W, Cout = 1, 16, 32, 32, 64
    x9 = jax.random.normal(k1, (N, C, H, W), dtype=jnp.float32)
    x5 = jax.random.normal(k2, (N, C, H, W), dtype=jnp.float32)

    # Deterministic synthetic parameters (not loading any checkpoint).
    gamma = 1.0 + 0.1 * jax.random.normal(k3, (C,), dtype=jnp.float32)
    beta = 0.1 * jax.random.normal(k4, (C,), dtype=jnp.float32)
    conv_w = 0.1 * jax.random.normal(k5, (Cout, C, 1, 1), dtype=jnp.float32)

    # TODO(synk): running_mean/running_var/momentum bookkeeping of BatchNorm2d
    # is not reproduced (it does not affect this forward pass's output).

    ref = reference(x9, x5, gamma, beta, conv_w)

    # Multi-tile path (grid > 1): small per-tile budget forces 2 output tiles.
    out_tiled = jax.block_until_ready(
        bn_add_conv1x1(x9, x5, gamma, beta, conv_w,
                       max_out_tile_bytes=128 * 1024))
    # Single-tile path (grid == 1): default budget holds the whole problem.
    out_single = jax.block_until_ready(
        bn_add_conv1x1(x9, x5, gamma, beta, conv_w))

    for out in (out_tiled, out_single):
        assert out.shape == (N, Cout, H, W), out.shape
        max_err = float(jnp.max(jnp.abs(out - ref)))
        assert jnp.allclose(out, ref, atol=2e-4, rtol=2e-4), max_err

    print("KERNEL_OK")
</pallas_src>

<mosaic_0001>
module attributes {stable_mosaic.version = 11 : i64} {
  func.func @_fused_bn_add_conv_kernel(%arg0: i32, %arg1: memref<16x1024xf32, #tpu.memory_space<vmem>>, %arg2: memref<16x512xf32, #tpu.memory_space<vmem>>, %arg3: memref<16x1xf32, #tpu.memory_space<vmem>>, %arg4: memref<16x1xf32, #tpu.memory_space<vmem>>, %arg5: memref<64x16xf32, #tpu.memory_space<vmem>>, %arg6: memref<64x512xf32, #tpu.memory_space<vmem>>, %arg7: memref<16x1xf32, #tpu.memory_space<vmem>>, %arg8: memref<16x1xf32, #tpu.memory_space<vmem>>) attributes {dimension_semantics = [#tpu.dimension_semantics<arbitrary>], iteration_bounds = array<i64: 2>, scalar_prefetch = 0 : i64, scratch_operands = 2 : i64, tpu.core_type = #tpu.core_type<tc>, window_params = [{pipeline_mode = #tpu.pipeline_mode<synchronous>, transform_indices = @transform_0, window_bounds = array<i64: 16, 1024>}, {transform_indices = @transform_1, window_bounds = array<i64: 16, 512>}, {pipeline_mode = #tpu.pipeline_mode<synchronous>, transform_indices = @transform_2, window_bounds = array<i64: 16, 1>}, {pipeline_mode = #tpu.pipeline_mode<synchronous>, transform_indices = @transform_3, window_bounds = array<i64: 16, 1>}, {pipeline_mode = #tpu.pipeline_mode<synchronous>, transform_indices = @transform_4, window_bounds = array<i64: 64, 16>}, {transform_indices = @transform_5, window_bounds = array<i64: 64, 512>}]} {
    %c0_i32 = arith.constant 0 : i32
    %0 = arith.cmpi eq, %arg0, %c0_i32 : i32
    %1 = arith.extui %0 : i1 to i32
    %c0_i32_0 = arith.constant 0 : i32
    %2 = arith.cmpi ne, %1, %c0_i32_0 : i32
    scf.if %2 {
      %c0_11 = arith.constant 0 : index
      %c0_12 = arith.constant 0 : index
      %18 = vector.load %arg1[%c0_11, %c0_12] : memref<16x1024xf32, #tpu.memory_space<vmem>>, vector<16x1024xf32>
      %cst_13 = arith.constant dense<0.000000e+00> : vector<16xf32>
      %19 = vector.multi_reduction <add>, %18, %cst_13 [1] : vector<16x1024xf32> to vector<16xf32>
      %20 = vector.shape_cast %19 : vector<16xf32> to vector<16x1xf32>
      %cst_14 = arith.constant 9.765625E-4 : f32
      %21 = vector.broadcast %cst_14 : f32 to vector<16x1xf32>
      %22 = arith.mulf %20, %21 : vector<16x1xf32>
      %23 = vector.broadcast %22 : vector<16x1xf32> to vector<16x1024xf32>
      %24 = arith.subf %18, %23 : vector<16x1024xf32>
      %25 = arith.mulf %24, %24 : vector<16x1024xf32>
      %cst_15 = arith.constant dense<0.000000e+00> : vector<16xf32>
      %26 = vector.multi_reduction <add>, %25, %cst_15 [1] : vector<16x1024xf32> to vector<16xf32>
      %27 = vector.shape_cast %26 : vector<16xf32> to vector<16x1xf32>
      %cst_16 = arith.constant 9.765625E-4 : f32
      %28 = vector.broadcast %cst_16 : f32 to vector<16x1xf32>
      %29 = arith.mulf %27, %28 : vector<16x1xf32>
      %c0_17 = arith.constant 0 : index
      %c0_18 = arith.constant 0 : index
      %30 = vector.load %arg3[%c0_17, %c0_18] : memref<16x1xf32, #tpu.memory_space<vmem>>, vector<16x1xf32>
      %cst_19 = arith.constant 1.000000e-03 : f32
      %31 = vector.broadcast %cst_19 : f32 to vector<16x1xf32>
      %32 = arith.addf %29, %31 : vector<16x1xf32>
      %33 = math.rsqrt %32 : vector<16x1xf32>
      %34 = arith.mulf %30, %33 : vector<16x1xf32>
      %c0_20 = arith.constant 0 : index
      %c0_21 = arith.constant 0 : index
      %35 = vector.load %arg7[%c0_20, %c0_21] : memref<16x1xf32, #tpu.memory_space<vmem>>, vector<16x1xf32>
      tpu.vector_store %arg7[%c0_20, %c0_21], %34 {strides = array<i32>} : memref<16x1xf32, #tpu.memory_space<vmem>>, vector<16x1xf32>,
      %c0_22 = arith.constant 0 : index
      %c0_23 = arith.constant 0 : index
      %36 = vector.load %arg4[%c0_22, %c0_23] : memref<16x1xf32, #tpu.memory_space<vmem>>, vector<16x1xf32>
      %37 = arith.mulf %22, %34 : vector<16x1xf32>
      %38 = arith.subf %36, %37 : vector<16x1xf32>
      %c0_24 = arith.constant 0 : index
      %c0_25 = arith.constant 0 : index
      %39 = vector.load %arg8[%c0_24, %c0_25] : memref<16x1xf32, #tpu.memory_space<vmem>>, vector<16x1xf32>
      tpu.vector_store %arg8[%c0_24, %c0_25], %38 {strides = array<i32>} : memref<16x1xf32, #tpu.memory_space<vmem>>, vector<16x1xf32>,
    } else {
    }
    %c512_i32 = arith.constant 512 : i32
    %3 = arith.muli %arg0, %c512_i32 : i32
    %4 = tpu.assume_multiple %3, 128 : i32
    %c0 = arith.constant 0 : index
    %5 = arith.index_cast %4 : i32 to index
    %6 = vector.load %arg1[%c0, %5] : memref<16x1024xf32, #tpu.memory_space<vmem>>, vector<16x512xf32>
    %c0_1 = arith.constant 0 : index
    %c0_2 = arith.constant 0 : index
    %7 = vector.load %arg7[%c0_1, %c0_2] : memref<16x1xf32, #tpu.memory_space<vmem>>, vector<16x1xf32>
    %8 = vector.broadcast %7 : vector<16x1xf32> to vector<16x512xf32>
    %9 = arith.mulf %6, %8 : vector<16x512xf32>
    %c0_3 = arith.constant 0 : index
    %c0_4 = arith.constant 0 : index
    %10 = vector.load %arg8[%c0_3, %c0_4] : memref<16x1xf32, #tpu.memory_space<vmem>>, vector<16x1xf32>
    %11 = vector.broadcast %10 : vector<16x1xf32> to vector<16x512xf32>
    %12 = arith.addf %9, %11 : vector<16x512xf32>
    %c0_5 = arith.constant 0 : index
    %c0_6 = arith.constant 0 : index
    %13 = vector.load %arg2[%c0_5, %c0_6] : memref<16x512xf32, #tpu.memory_space<vmem>>, vector<16x512xf32>
    %14 = arith.addf %12, %13 : vector<16x512xf32>
    %c0_7 = arith.constant 0 : index
    %c0_8 = arith.constant 0 : index
    %15 = vector.load %arg5[%c0_7, %c0_8] : memref<64x16xf32, #tpu.memory_space<vmem>>, vector<64x16xf32>
    %cst = arith.constant dense<0.000000e+00> : vector<64x512xf32>
    %16 = tpu.matmul %15, %14, %cst {dimension_numbers = #tpu.dot_dimension_numbers<[1], [0], [0], [1], [0, 0, 1, 1], [], []>} : vector<64x16xf32>, vector<16x512xf32>, vector<64x512xf32> -> vector<64x512xf32>
    %c0_9 = arith.constant 0 : index
    %c0_10 = arith.constant 0 : index
    %17 = vector.load %arg6[%c0_9, %c0_10] : memref<64x512xf32, #tpu.memory_space<vmem>>, vector<64x512xf32>
    tpu.vector_store %arg6[%c0_9, %c0_10], %16 {strides = array<i32>} : memref<64x512xf32, #tpu.memory_space<vmem>>, vector<64x512xf32>,
    return
  }
  func.func @transform_0(%arg0: i32) -> (i32, i32) {
    %c0_i32 = arith.constant 0 : i32
    %c0_i32_0 = arith.constant 0 : i32
    %c0_i32_1 = arith.constant 0 : i32
    return %c0_i32, %c0_i32_0 : i32, i32
  }
  func.func @transform_1(%arg0: i32) -> (i32, i32) {
    %c0_i32 = arith.constant 0 : i32
    %c0_i32_0 = arith.constant 0 : i32
    return %c0_i32, %arg0 : i32, i32
  }
  func.func @transform_2(%arg0: i32) -> (i32, i32) {
    %c0_i32 = arith.constant 0 : i32
    %c0_i32_0 = arith.constant 0 : i32
    %c0_i32_1 = arith.constant 0 : i32
    return %c0_i32, %c0_i32_0 : i32, i32
  }
  func.func @transform_3(%arg0: i32) -> (i32, i32) {
    %c0_i32 = arith.constant 0 : i32
    %c0_i32_0 = arith.constant 0 : i32
    %c0_i32_1 = arith.constant 0 : i32
    return %c0_i32, %c0_i32_0 : i32, i32
  }
  func.func @transform_4(%arg0: i32) -> (i32, i32) {
    %c0_i32 = arith.constant 0 : i32
    %c0_i32_0 = arith.constant 0 : i32
    %c0_i32_1 = arith.constant 0 : i32
    return %c0_i32, %c0_i32_0 : i32, i32
  }
  func.func @transform_5(%arg0: i32) -> (i32, i32) {
    %c0_i32 = arith.constant 0 : i32
    %c0_i32_0 = arith.constant 0 : i32
    return %c0_i32, %arg0 : i32, i32
  }
}

</mosaic_0001>

<llo_original>
// kernel: bn_add_conv1x1.1
$region0: #{bn_add_conv1x1.1}
  #allocation0 [shape = 'u32[]', space=smem, size = 0x4, offset = 0x4, fixed_abs, tag = 'smem constant byte address 0x4 - core index']
  #allocation1 [shape = 'u32[144,128]{1,0:T(1,128)}', space=vmem, size = 0x12000, scoped, tag = 'internal scratch']
  #allocation2 [shape = 'f32[16,1]{1,0:T(8,128)}', space=vmem, size = 0x2000, scoped, tag = 'scratch operand']
  #allocation3 [shape = 'f32[16,1]{1,0:T(8,128)}', space=vmem, size = 0x2000, scoped, tag = 'scratch operand']
  %s0 = inlined_call_operand.vmem [shape: f32[16,1024], index: 0, kind: input, shape index: {}]
  %s1 = inlined_call_operand.vmem [shape: f32[16,1024], index: 1, kind: input, shape index: {}]
  %s2 = inlined_call_operand.vmem [shape: f32[16,1], index: 2, kind: input, shape index: {}]
  %s3 = inlined_call_operand.vmem [shape: f32[16,1], index: 3, kind: input, shape index: {}]
  %s4 = inlined_call_operand.vmem [shape: f32[64,16], index: 4, kind: input, shape index: {}]
  %s5 = inlined_call_operand.vmem [shape: f32[64,1024], index: 5, kind: output, shape index: {}]
  %s6 = sld [smem:[#allocation0]]
  $region99: #{bn_add_conv1x1.1} parent=0
    _
  %s8 = ssub.s32 1, %s6
  %s9 = scalar_select 0, %s8, %s6
  $region1: #{bn_add_conv1x1.1} parent=0
    #allocation4 [shape = 'u8[65536]{0}', space=vmem, size = 0x10000, scoped, tag = 'input window, operand 1']
    #allocation5 [shape = 'u8[262144]{0}', space=vmem, size = 0x40000, scoped, tag = 'output window, operand 0']
    loop: start=0, step=1, limit=4
    $region2: #{bn_add_conv1x1.1} parent=1 // loop_pre_header
      _
    $region3: #{bn_add_conv1x1.1} parent=1 // loop_header
      %s11 = sphi 0, %s15
      %p12 = scmp.ge.s32.totalorder %s11, 4
      %s19 = sphi 0, %s19
      %s21 = sphi 0, %s19
      %s22 = sphi 0, %s21
      %s36 = sphi 0, %s22
      %s42 = sphi 0, %s44
      %s45 = sphi 0, %s42
      %s46 = sphi 0, %s45
      %s62 = sphi 0, %s46
      %s66 = sphi 0, %s66
      %s68 = sphi 0, %s66
      %s69 = sphi 0, %s68
      %s83 = sphi 0, %s69
      %s87 = sphi 0, %s87
      %s89 = sphi 0, %s87
      %s90 = sphi 0, %s89
      %s104 = sphi 0, %s90
      %s108 = sphi 0, %s108
      %s110 = sphi 0, %s108
      %s111 = sphi 0, %s110
      %s125 = sphi 0, %s111
      %s131 = sphi 0, %s133
      %s134 = sphi 0, %s131
      %s135 = sphi 0, %s134
      %s151 = sphi 0, %s135
    $region4: #{bn_add_conv1x1.1} parent=1 // loop_header_branch
      %14 = sbr.rel (%p12) target = $region8
    $region5: #{bn_add_conv1x1.1} parent=1 // loop_body
      %s16 = ssub.s32 %s11, 1
      %s17 = ssub.s32 %s11, 2
      %s18 = sadd.s32 %s11, 1
      %s20 = sadd.s32 %s19, 1
      %p23 = scmp.eq.s32.totalorder %s11, 1
      %p24 = scmp.ne.s32.totalorder %s19, %s21
      %p25 = scmp.eq.s32.totalorder %s11, 0
      %p26 = por %p24, %p25
      %p27 = scmp.ne.s32.totalorder %s19, %s21
      %p28 = scmp.eq.s32.totalorder %s16, 1
      %p29 = por %p27, %p28
      %p30 = scmp.ne.s32.totalorder %s21, %s22
      %p31 = scmp.eq.s32.totalorder %s16, 0
      %p32 = por %p30, %p31
      %p33 = scmp.ne.s32.totalorder %s21, %s22
      %p34 = scmp.eq.s32.totalorder %s17, 1
      %p35 = por %p33, %p34
      %p37 = scmp.ne.s32.totalorder %s22, %s36
      %p38 = scmp.eq.s32.totalorder %s17, 0
      %p39 = por %p37, %p38
      %s40 = ssub.s32 %s11, %s18
      %p41 = scmp.eq.s32.totalorder %s40, 0
      %s43 = sadd.s32 %s42, 1
      %s44 = scalar_select %p41, %s42, %s43
      %p47 = pneg %p41
      %p48 = scmp.eq.s32.totalorder %s11, 1
      %p49 = por %p47, %p48
      %p50 = scmp.ne.s32.totalorder %s42, %s45
      %p51 = scmp.eq.s32.totalorder %s11, 0
      %p52 = por %p50, %p51
      %p53 = scmp.ne.s32.totalorder %s42, %s45
      %p54 = scmp.eq.s32.totalorder %s16, 1
      %p55 = por %p53, %p54
      %p56 = scmp.ne.s32.totalorder %s45, %s46
      %p57 = scmp.eq.s32.totalorder %s16, 0
      %p58 = por %p56, %p57
      %p59 = scmp.ne.s32.totalorder %s45, %s46
      %p60 = scmp.eq.s32.totalorder %s17, 1
      %p61 = por %p59, %p60
      %p63 = scmp.ne.s32.totalorder %s46, %s62
      %p64 = scmp.eq.s32.totalorder %s17, 0
      %p65 = por %p63, %p64
      %s67 = sadd.s32 %s66, 1
      %p70 = scmp.eq.s32.totalorder %s11, 1
      %p71 = scmp.ne.s32.totalorder %s66, %s68
      %p72 = scmp.eq.s32.totalorder %s11, 0
      %p73 = por %p71, %p72
      %p74 = scmp.ne.s32.totalorder %s66, %s68
      %p75 = scmp.eq.s32.totalorder %s16, 1
      %p76 = por %p74, %p75
      %p77 = scmp.ne.s32.totalorder %s68, %s69
      %p78 = scmp.eq.s32.totalorder %s16, 0
      %p79 = por %p77, %p78
      %p80 = scmp.ne.s32.totalorder %s68, %s69
      %p81 = scmp.eq.s32.totalorder %s17, 1
      %p82 = por %p80, %p81
      %p84 = scmp.ne.s32.totalorder %s69, %s83
      %p85 = scmp.eq.s32.totalorder %s17, 0
      %p86 = por %p84, %p85
      %s88 = sadd.s32 %s87, 1
      %p91 = scmp.eq.s32.totalorder %s11, 1
      %p92 = scmp.ne.s32.totalorder %s87, %s89
      %p93 = scmp.eq.s32.totalorder %s11, 0
      %p94 = por %p92, %p93
      %p95 = scmp.ne.s32.totalorder %s87, %s89
      %p96 = scmp.eq.s32.totalorder %s16, 1
      %p97 = por %p95, %p96
      %p98 = scmp.ne.s32.totalorder %s89, %s90
      %p99 = scmp.eq.s32.totalorder %s16, 0
      %p100 = por %p98, %p99
      %p101 = scmp.ne.s32.totalorder %s89, %s90
      %p102 = scmp.eq.s32.totalorder %s17, 1
      %p103 = por %p101, %p102
      %p105 = scmp.ne.s32.totalorder %s90, %s104
      %p106 = scmp.eq.s32.totalorder %s17, 0
      %p107 = por %p105, %p106
      %s109 = sadd.s32 %s108, 1
      %p112 = scmp.eq.s32.totalorder %s11, 1
      %p113 = scmp.ne.s32.totalorder %s108, %s110
      %p114 = scmp.eq.s32.totalorder %s11, 0
      %p115 = por %p113, %p114
      %p116 = scmp.ne.s32.totalorder %s108, %s110
      %p117 = scmp.eq.s32.totalorder %s16, 1
      %p118 = por %p116, %p117
      %p119 = scmp.ne.s32.totalorder %s110, %s111
      %p120 = scmp.eq.s32.totalorder %s16, 0
      %p121 = por %p119, %p120
      %p122 = scmp.ne.s32.totalorder %s110, %s111
      %p123 = scmp.eq.s32.totalorder %s17, 1
      %p124 = por %p122, %p123
      %p126 = scmp.ne.s32.totalorder %s111, %s125
      %p127 = scmp.eq.s32.totalorder %s17, 0
      %p128 = por %p126, %p127
      %s129 = ssub.s32 %s11, %s18
      %p130 = scmp.eq.s32.totalorder %s129, 0
      %s132 = sadd.s32 %s131, 1
      %s133 = scalar_select %p130, %s131, %s132
      %p136 = pneg %p130
      %p137 = scmp.eq.s32.totalorder %s11, 1
      %p138 = por %p136, %p137
      %p139 = scmp.ne.s32.totalorder %s131, %s134
      %p140 = scmp.eq.s32.totalorder %s11, 0
      %p141 = por %p139, %p140
      %p142 = scmp.ne.s32.totalorder %s131, %s134
      %p143 = scmp.eq.s32.totalorder %s16, 1
      %p144 = por %p142, %p143
      %p145 = scmp.ne.s32.totalorder %s134, %s135
      %p146 = scmp.eq.s32.totalorder %s16, 0
      %p147 = por %p145, %p146
      %p148 = scmp.ne.s32.totalorder %s134, %s135
      %p149 = scmp.eq.s32.totalorder %s17, 1
      %p150 = por %p148, %p149
      %p152 = scmp.ne.s32.totalorder %s135, %s151
      %p153 = scmp.eq.s32.totalorder %s17, 0
      %p154 = por %p152, %p153
      %p155 = scmp.le.s32.totalorder 1, %s11
      %p156 = scmp.lt.s32.totalorder %s11, 3
      %p157 = pnand %p155, %p156
      %p158 = pneg %p157
      // Predicated region
      $region9: #{bn_add_conv1x1.1} parent=5 // pred_check
        _
      $region10: #{bn_add_conv1x1.1} parent=5 // pred_check_branch
        %160 = sbr.rel (%p157) target = $region12
      $region11: #{bn_add_conv1x1.1} parent=5 // pred_region
        %s161 = ssub.s32 %s11, 1
        // Predicated region
        $region13: #{bn_add_conv1x1.1} parent=11 // pred_check
          %p162 = pneg %p32
        $region14: #{bn_add_conv1x1.1} parent=11 // pred_check_branch
          %164 = sbr.rel (%p162) target = $region16
        $region15: #{bn_add_conv1x1.1} parent=11 // pred_region
          _
        $region16: #{bn_add_conv1x1.1} parent=11 // pred_fallthru
          _
        // Predicated region
        $region17: #{bn_add_conv1x1.1} parent=11 // pred_check
          %p165 = pneg %p79
        $region18: #{bn_add_conv1x1.1} parent=11 // pred_check_branch
          %167 = sbr.rel (%p165) target = $region20
        $region19: #{bn_add_conv1x1.1} parent=11 // pred_region
          _
        $region20: #{bn_add_conv1x1.1} parent=11 // pred_fallthru
          _
        // Predicated region
        $region21: #{bn_add_conv1x1.1} parent=11 // pred_check
          %p168 = pneg %p100
        $region22: #{bn_add_conv1x1.1} parent=11 // pred_check_branch
          %170 = sbr.rel (%p168) target = $region24
        $region23: #{bn_add_conv1x1.1} parent=11 // pred_region
          _
        $region24: #{bn_add_conv1x1.1} parent=11 // pred_fallthru
          _
        // Predicated region
        $region25: #{bn_add_conv1x1.1} parent=11 // pred_check
          %p171 = pneg %p121
        $region26: #{bn_add_conv1x1.1} parent=11 // pred_check_branch
          %173 = sbr.rel (%p171) target = $region28
        $region27: #{bn_add_conv1x1.1} parent=11 // pred_region
          _
        $region28: #{bn_add_conv1x1.1} parent=11 // pred_fallthru
          _
      $region12: #{bn_add_conv1x1.1} parent=5 // pred_fallthru
        _
      %p174 = scmp.lt.s32.totalorder %s11, 2
      // Predicated region
      $region29: #{bn_add_conv1x1.1} parent=5 // pred_check
        %p175 = pneg %p174
      $region30: #{bn_add_conv1x1.1} parent=5 // pred_check_branch
        %177 = sbr.rel (%p175) target = $region32
      $region31: #{bn_add_conv1x1.1} parent=5 // pred_region
        // Predicated region
        $region33: #{bn_add_conv1x1.1} parent=31 // pred_check
          %p178 = pneg %p52
        $region34: #{bn_add_conv1x1.1} parent=31 // pred_check_branch
          %180 = sbr.rel (%p178) target = $region36
        $region35: #{bn_add_conv1x1.1} parent=31 // pred_region
          %s181 = sand.u32 %s42, 1
          %s182 = sand.u32 %s42, 1
          %s183 = smul.addr %s182, 64
          %s184 = scalar_lea.vmem [#allocation4], %s183
          %s185 = smul.u32 4, %s11
          %s186 = smul.addr %s185, 8
          %s187 = scalar_lea.vmem %s1, %s186
          // Predicated region
          $region37: #{bn_add_conv1x1.1} parent=35 // pred_check
            _
          $region38: #{bn_add_conv1x1.1} parent=35 // pred_check_branch
            %189 = sbr.rel (0) target = $region40
          $region39: #{bn_add_conv1x1.1} parent=35 // pred_region
            // Predicated region
            $region41: #{bn_add_conv1x1.1} parent=39 // pred_check
              _
            $region42: #{bn_add_conv1x1.1} parent=39 // pred_check_branch
              %191 = sbr.rel (0) target = $region44
            $region43: #{bn_add_conv1x1.1} parent=39 // pred_region
              loop: start=0, step=1, limit=1
              $region45: #{bn_add_conv1x1.1} parent=43 // loop_pre_header
                _
              $region46: #{bn_add_conv1x1.1} parent=43 // loop_header
                %s193 = sphi 0, %s197
                %p194 = scmp.ge.s32.totalorder %s193, 1
                %s198 = sphi %s187, %s187
                %s199 = sphi %s184, %s184
              $region47: #{bn_add_conv1x1.1} parent=43 // loop_header_branch
                %196 = sbr.rel (%p194) target = $region51
              $region48: #{bn_add_conv1x1.1} parent=43 // loop_body
                %v200 = vld [vmem:[%s198] sm:$0xff]
                %201 = vst [vmem:[%s199] sm:$0xff] %v200
                %v202 = vld [vmem:[%s198 + $0x8] sm:$0xff]
                %203 = vst [vmem:[%s199 + $0x8] sm:$0xff] %v202
                %v204 = vld [vmem:[%s198 + $0x10] sm:$0xff]
                %205 = vst [vmem:[%s199 + $0x10] sm:$0xff] %v204
                %v206 = vld [vmem:[%s198 + $0x18] sm:$0xff]
                %207 = vst [vmem:[%s199 + $0x18] sm:$0xff] %v206
                %v208 = vld [vmem:[%s198 + $0x40] sm:$0xff]
                %209 = vst [vmem:[%s199 + $0x20] sm:$0xff] %v208
                %v210 = vld [vmem:[%s198 + $0x48] sm:$0xff]
                %211 = vst [vmem:[%s199 + $0x28] sm:$0xff] %v210
                %v212 = vld [vmem:[%s198 + $0x50] sm:$0xff]
                %213 = vst [vmem:[%s199 + $0x30] sm:$0xff] %v212
                %v214 = vld [vmem:[%s198 + $0x58] sm:$0xff]
                %215 = vst [vmem:[%s199 + $0x38] sm:$0xff] %v214
              $region49: #{bn_add_conv1x1.1} parent=43 // loop_footer
                %s197 = sadd.s32 1, %s193
              $region50: #{bn_add_conv1x1.1} parent=43 // loop_footer_branch
                %192 = sbr.rel target = $region46
              $region51: #{bn_add_conv1x1.1} parent=43 // loop_exit
                _
            $region44: #{bn_add_conv1x1.1} parent=39 // pred_fallthru
              _
            // Predicated region
            $region52: #{bn_add_conv1x1.1} parent=39 // pred_check
              _
            $region53: #{bn_add_conv1x1.1} parent=39 // pred_check_branch
              %217 = sbr.rel target = $region55
            $region54: #{bn_add_conv1x1.1} parent=39 // pred_region
              _
            $region55: #{bn_add_conv1x1.1} parent=39 // pred_fallthru
              _
          $region40: #{bn_add_conv1x1.1} parent=35 // pred_fallthru
            _
          %218 = vnop
        $region36: #{bn_add_conv1x1.1} parent=31 // pred_fallthru
          _
      $region32: #{bn_add_conv1x1.1} parent=5 // pred_fallthru
        _
      %p219 = scmp.le.s32.totalorder 1, %s11
      %p220 = scmp.lt.s32.totalorder %s11, 3
      %p221 = pnand %p219, %p220
      %p222 = pneg %p221
      // Predicated region
      $region56: #{bn_add_conv1x1.1} parent=5 // pred_check
        _
      $region57: #{bn_add_conv1x1.1} parent=5 // pred_check_branch
        %224 = sbr.rel (%p221) target = $region59
      $region58: #{bn_add_conv1x1.1} parent=5 // pred_region
        %s225 = ssub.s32 %s11, 1
        %s226 = sand.u32 %s45, 1
        %s227 = sand.u32 %s45, 1
        %s228 = smul.addr %s227, 64
        %s229 = scalar_lea.vmem [#allocation4], %s228
        // Predicated region
        $region60: #{bn_add_conv1x1.1} parent=58 // pred_check
          %p230 = pneg %p58
        $region61: #{bn_add_conv1x1.1} parent=58 // pred_check_branch
          %232 = sbr.rel (%p230) target = $region63
        $region62: #{bn_add_conv1x1.1} parent=58 // pred_region
          _
        $region63: #{bn_add_conv1x1.1} parent=58 // pred_fallthru
          _
        %p233 = pneg %p32
        %p234 = pneg %p29
        %s235 = sand.u32 %s45, 1
        %s236 = sand.u32 %s45, 1
        %s237 = smul.addr %s236, 64
        %s238 = scalar_lea.vmem [#allocation4], %s237
        %p239 = pneg %p58
        %p240 = pneg %p55
        %p241 = pneg %p79
        %p242 = pneg %p76
        %p243 = pneg %p100
        %p244 = pneg %p97
        %p245 = pneg %p121
        %p246 = pneg %p118
        %p247 = pneg %p147
        %p248 = pneg %p144
        %s249 = sand.u32 %s134, 1
        %s250 = sand.u32 %s134, 1
        %s251 = smul.addr %s250, 256
        %s252 = scalar_lea.vmem [#allocation5], %s251
        %s253 = smul.u32 4, %s16
        %s254 = smul.u32 4, %s16
        %p255 = scmp.eq.s32.totalorder %s16, 0
        // Predicated region
        $region64: #{bn_add_conv1x1.1} parent=58 // pred_check
          %p256 = pneg %p255
        $region65: #{bn_add_conv1x1.1} parent=58 // pred_check_branch
          %258 = sbr.rel (%p256) target = $region67
        $region66: #{bn_add_conv1x1.1} parent=58 // pred_region
          %v259 = vld [vmem:[%s0] sm:$0xff]
          %v260 = vld [vmem:[%s0 + $0x8] sm:$0xff]
          %v261 = vld [vmem:[%s0 + $0x10] sm:$0xff]
          %v262 = vld [vmem:[%s0 + $0x18] sm:$0xff]
          %v263 = vld [vmem:[%s0 + $0x20] sm:$0xff]
          %v264 = vld [vmem:[%s0 + $0x28] sm:$0xff]
          %v265 = vld [vmem:[%s0 + $0x30] sm:$0xff]
          %v266 = vld [vmem:[%s0 + $0x38] sm:$0xff]
          %v267 = vld [vmem:[%s0 + $0x40] sm:$0xff]
          %v268 = vld [vmem:[%s0 + $0x48] sm:$0xff]
          %v269 = vld [vmem:[%s0 + $0x50] sm:$0xff]
          %v270 = vld [vmem:[%s0 + $0x58] sm:$0xff]
          %v271 = vld [vmem:[%s0 + $0x60] sm:$0xff]
          %v272 = vld [vmem:[%s0 + $0x68] sm:$0xff]
          %v273 = vld [vmem:[%s0 + $0x70] sm:$0xff]
          %v274 = vld [vmem:[%s0 + $0x78] sm:$0xff]
          %v275 = vadd.f32 %v259, %v260
          %v276 = vadd.f32 %v275, %v261
          %v277 = vadd.f32 %v276, %v262
          %v278 = vadd.f32 %v277, %v263
          %v279 = vadd.f32 %v278, %v264
          %v280 = vadd.f32 %v279, %v265
          %v281 = vadd.f32 %v280, %v266
          %282 = vadd.xlane.f32.xlu0 %v281
          %v283 = vpop.xlane.xlu0 %282
          %v284 = vadd.f32 %v267, %v268
          %v285 = vadd.f32 %v284, %v269
          %v286 = vadd.f32 %v285, %v270
          %v287 = vadd.f32 %v286, %v271
          %v288 = vadd.f32 %v287, %v272
          %v289 = vadd.f32 %v288, %v273
          %v290 = vadd.f32 %v289, %v274
          %291 = vadd.xlane.f32.xlu0 %v290
          %v292 = vpop.xlane.xlu0 %291
          %v293 = vmul.f32 %v283, 0.0009765625
          %v294 = vmul.f32 %v292, 0.0009765625
          %v295 = vsub.f32 %v259, %v293
          %v296 = vsub.f32 %v260, %v293
          %v297 = vsub.f32 %v261, %v293
          %v298 = vsub.f32 %v262, %v293
          %v299 = vsub.f32 %v263, %v293
          %v300 = vsub.f32 %v264, %v293
          %v301 = vsub.f32 %v265, %v293
          %v302 = vsub.f32 %v266, %v293
          %v303 = vsub.f32 %v267, %v294
          %v304 = vsub.f32 %v268, %v294
          %v305 = vsub.f32 %v269, %v294
          %v306 = vsub.f32 %v270, %v294
          %v307 = vsub.f32 %v271, %v294
          %v308 = vsub.f32 %v272, %v294
          %v309 = vsub.f32 %v273, %v294
          %v310 = vsub.f32 %v274, %v294
          %v311 = vmul.f32 %v295, %v295
          %v312 = vmul.f32 %v296, %v296
          %v313 = vmul.f32 %v297, %v297
          %v314 = vmul.f32 %v298, %v298
          %v315 = vmul.f32 %v299, %v299
          %v316 = vmul.f32 %v300, %v300
          %v317 = vmul.f32 %v301, %v301
          %v318 = vmul.f32 %v302, %v302
          %v319 = vmul.f32 %v303, %v303
          %v320 = vmul.f32 %v304, %v304
          %v321 = vmul.f32 %v305, %v305
          %v322 = vmul.f32 %v306, %v306
          %v323 = vmul.f32 %v307, %v307
          %v324 = vmul.f32 %v308, %v308
          %v325 = vmul.f32 %v309, %v309
          %v326 = vmul.f32 %v310, %v310
          %v327 = vadd.f32 %v311, %v312
          %v328 = vadd.f32 %v327, %v313
          %v329 = vadd.f32 %v328, %v314
          %v330 = vadd.f32 %v329, %v315
          %v331 = vadd.f32 %v330, %v316
          %v332 = vadd.f32 %v331, %v317
          %v333 = vadd.f32 %v332, %v318
          %334 = vadd.xlane.f32.xlu0 %v333
          %v335 = vpop.xlane.xlu0 %334
          %v336 = vadd.f32 %v319, %v320
          %v337 = vadd.f32 %v336, %v321
          %v338 = vadd.f32 %v337, %v322
          %v339 = vadd.f32 %v338, %v323
          %v340 = vadd.f32 %v339, %v324
          %v341 = vadd.f32 %v340, %v325
          %v342 = vadd.f32 %v341, %v326
          %343 = vadd.xlane.f32.xlu0 %v342
          %v344 = vpop.xlane.xlu0 %343
          %v345 = vmul.f32 %v335, 0.0009765625
          %v346 = vmul.f32 %v344, 0.0009765625
          %v347 = vld [vmem:[%s2] sm:$0xff]
          %v348 = vld [vmem:[%s2 + $0x8] sm:$0xff]
          %v349 = vadd.f32 %v345, 0.001
          %v350 = vadd.f32 %v346, 0.001
          %v351 = vrsqrt.pop %v349
          %v352 = vrsqrt.pop %v350
          %v353 = vmul.f32 %v347, %v351
          %v354 = vmul.f32 %v348, %v352
          %vm355 = vcmask 7168
          %356 = vst.msk [vmem:[#allocation2] sm:$0xff] %vm355, %v353
          %357 = vst.msk [vmem:[#allocation2 + $0x8] sm:$0xff] %vm355, %v354
          %v358 = vld [vmem:[%s3] sm:$0xff]
          %v359 = vld [vmem:[%s3 + $0x8] sm:$0xff]
          %v360 = vmul.f32 %v293, %v353
          %v361 = vmul.f32 %v294, %v354
          %v362 = vsub.f32 %v358, %v360
          %v363 = vsub.f32 %v359, %v361
          %364 = vst.msk [vmem:[#allocation3] sm:$0xff] %vm355, %v362
          %365 = vst.msk [vmem:[#allocation3 + $0x8] sm:$0xff] %vm355, %v363
        $region67: #{bn_add_conv1x1.1} parent=58 // pred_fallthru
          _
        %s366 = smul.u32 %s16, 512
        %s367 = sshra.s32 %s366, 7
        %s368 = sand.u32 %s366, 127
        %s369 = smul.addr %s367, 8
        %s370 = scalar_lea.vmem %s0, %s369
        %v371 = vld [vmem:[%s370] sm:$0xff]
        %v372 = vld [vmem:[%s370 + $0x8] sm:$0xff]
        %v373 = vld [vmem:[%s370 + $0x10] sm:$0xff]
        %v374 = vld [vmem:[%s370 + $0x18] sm:$0xff]
        %v375 = vld [vmem:[%s370 + $0x40] sm:$0xff]
        %v376 = vld [vmem:[%s370 + $0x48] sm:$0xff]
        %v377 = vld [vmem:[%s370 + $0x50] sm:$0xff]
        %v378 = vld [vmem:[%s370 + $0x58] sm:$0xff]
        %v379 = vld [vmem:[#allocation2] sm:$0xff]
        %v380 = vld [vmem:[#allocation2 + $0x8] sm:$0xff]
        %382 = vset.pattern.permute.xlu0 0
        %383 = vperm.xlu0 %382, %v379
        %v384 = vpop.permute.xlu0 %383
        %387 = vset.pattern.permute.xlu0 0
        %388 = vperm.xlu0 %387, %v380
        %v389 = vpop.permute.xlu0 %388
        %v391 = vmul.f32 %v371, %v384
        %v392 = vmul.f32 %v372, %v384
        %v393 = vmul.f32 %v373, %v384
        %v394 = vmul.f32 %v374, %v384
        %v395 = vmul.f32 %v375, %v389
        %v396 = vmul.f32 %v376, %v389
        %v397 = vmul.f32 %v377, %v389
        %v398 = vmul.f32 %v378, %v389
        %v399 = vld [vmem:[#allocation3] sm:$0xff]
        %v400 = vld [vmem:[#allocation3 + $0x8] sm:$0xff]
        %402 = vset.pattern.permute.xlu0 0
        %403 = vperm.xlu0 %402, %v399
        %v404 = vpop.permute.xlu0 %403
        %407 = vset.pattern.permute.xlu0 0
        %408 = vperm.xlu0 %407, %v400
        %v409 = vpop.permute.xlu0 %408
        %v411 = vadd.f32 %v391, %v404
        %v412 = vadd.f32 %v392, %v404
        %v413 = vadd.f32 %v393, %v404
        %v414 = vadd.f32 %v394, %v404
        %v415 = vadd.f32 %v395, %v409
        %v416 = vadd.f32 %v396, %v409
        %v417 = vadd.f32 %v397, %v409
        %v418 = vadd.f32 %v398, %v409
        %v419 = vld [vmem:[%s229] sm:$0xff]
        %v420 = vld [vmem:[%s229 + $0x8] sm:$0xff]
        %v421 = vld [vmem:[%s229 + $0x10] sm:$0xff]
        %v422 = vld [vmem:[%s229 + $0x18] sm:$0xff]
        %v423 = vld [vmem:[%s229 + $0x20] sm:$0xff]
        %v424 = vld [vmem:[%s229 + $0x28] sm:$0xff]
        %v425 = vld [vmem:[%s229 + $0x30] sm:$0xff]
        %v426 = vld [vmem:[%s229 + $0x38] sm:$0xff]
        %v427 = vadd.f32 %v411, %v419
        %v428 = vadd.f32 %v412, %v420
        %v429 = vadd.f32 %v413, %v421
        %v430 = vadd.f32 %v414, %v422
        %v431 = vadd.f32 %v415, %v423
        %v432 = vadd.f32 %v416, %v424
        %v433 = vadd.f32 %v417, %v425
        %v434 = vadd.f32 %v418, %v426
        %v435 = vld [vmem:[%s4] sm:$0xff]
        %v436 = vld [vmem:[%s4 + $0x8] sm:$0xff]
        %v437 = vld [vmem:[%s4 + $0x10] sm:$0xff]
        %v438 = vld [vmem:[%s4 + $0x18] sm:$0xff]
        %v439 = vld [vmem:[%s4 + $0x20] sm:$0xff]
        %v440 = vld [vmem:[%s4 + $0x28] sm:$0xff]
        %v441 = vld [vmem:[%s4 + $0x30] sm:$0xff]
        %v442 = vld [vmem:[%s4 + $0x38] sm:$0xff]
        %vm443 = vcmask 130048
        %v445 = vsel %vm443, %v435, 0
        %v448 = vsel %vm443, %v436, 0
        %v451 = vsel %vm443, %v437, 0
        %v454 = vsel %vm443, %v438, 0
        %v457 = vsel %vm443, %v439, 0
        %v460 = vsel %vm443, %v440, 0
        %v463 = vsel %vm443, %v441, 0
        %v466 = vsel %vm443, %v442, 0
        %468 = vmatprep.subr.mxu0 %v428
        %469 = vmatpush1.msra.mxu0 %v427
        %470 = vmatprep.subr.mxu0 %v432
        %471 = vmatpush1.msra.mxu0 %v431
        %472 = vmatprep.subr.mxu0 0.0
        %473 = vmatpush1.msra.mxu0 0.0
        %474 = vmatprep.subr.mxu0 0.0
        %475 = vmatpush1.msra.mxu0 0.0
        %476 = vmatprep.subr.mxu0 0.0
        %477 = vmatpush1.msra.mxu0 0.0
        %478 = vmatprep.subr.mxu0 0.0
        %479 = vmatpush1.msra.mxu0 0.0
        %480 = vmatprep.subr.mxu0 0.0
        %481 = vmatpush1.msra.mxu0 0.0
        %482 = vmatprep.subr.mxu0 0.0
        %483 = vmatpush1.msra.mxu0 0.0
        %484 = vmatprep.subr.mxu0 0.0
        %485 = vmatpush1.msra.mxu0 0.0
        %486 = vmatprep.subr.mxu0 0.0
        %487 = vmatpush1.msra.mxu0 0.0
        %488 = vmatprep.subr.mxu0 0.0
        %489 = vmatpush1.msra.mxu0 0.0
        %490 = vmatprep.subr.mxu0 0.0
        %491 = vmatpush1.msra.mxu0 0.0
        %492 = vmatprep.subr.mxu0 0.0
        %493 = vmatpush1.msra.mxu0 0.0
        %494 = vmatprep.subr.mxu0 0.0
        %495 = vmatpush1.msra.mxu0 0.0
        %496 = vmatprep.subr.mxu0 0.0
        %497 = vmatpush1.msra.mxu0 0.0
        %498 = vmatprep.subr.mxu0 0.0
        %499 = vmatpush1.msra.mxu0 0.0
        %500 = vmatprep.subr.mxu0 0.0
        %501 = vmatpush1.msra.mxu0 0.0
        %502 = vmatprep.subr.mxu0 0.0
        %503 = vmatpush1.msra.mxu0 0.0
        %504 = vmatprep.subr.mxu0 0.0
        %505 = vmatpush1.msra.mxu0 0.0
        %506 = vmatprep.subr.mxu0 0.0
        %507 = vmatpush1.msra.mxu0 0.0
        %508 = vmatprep.subr.mxu0 0.0
        %509 = vmatpush1.msra.mxu0 0.0
        %510 = vmatprep.subr.mxu0 0.0
        %511 = vmatpush1.msra.mxu0 0.0
        %512 = vmatprep.subr.mxu0 0.0
        %513 = vmatpush1.msra.mxu0 0.0
        %514 = vmatprep.subr.mxu0 0.0
        %515 = vmatpush1.msra.mxu0 0.0
        %516 = vmatprep.subr.mxu0 0.0
        %517 = vmatpush1.msra.mxu0 0.0
        %518 = vmatprep.subr.mxu0 0.0
        %519 = vmatpush1.msra.mxu0 0.0
        %520 = vmatprep.subr.mxu0 0.0
        %521 = vmatpush1.msra.mxu0 0.0
        %522 = vmatprep.subr.mxu0 0.0
        %523 = vmatpush1.msra.mxu0 0.0
        %524 = vmatprep.subr.mxu0 0.0
        %525 = vmatpush1.msra.mxu0 0.0
        %526 = vmatprep.subr.mxu0 0.0
        %527 = vmatpush1.msra.mxu0 0.0
        %528 = vmatprep.subr.mxu0 0.0
        %529 = vmatpush1.msra.mxu0 0.0
        %530 = vmatprep.subr.mxu0 0.0
        %531 = vmatpush1.msra.mxu0 0.0
        %532 = vmatprep.mubr.f32.mxu0 0.0
        %533 = vmatmul.mubr.f32.gmra.mrb[0].mxu0 %v445
        %v534 = vpop.f32.mrb[0].mxu0
        %v535 = vadd.f32 0.0, %v534
        %v536 = vpop.f32.mrb[0].mxu0
        %v537 = vadd.f32 0.0, %v536
        %538 = vmatprep.mubr.f32.mxu0 0.0
        %539 = vmatmul.mubr.f32.gmra.mrb[0].mxu0 %v448
        %v540 = vpop.f32.mrb[0].mxu0
        %v541 = vadd.f32 0.0, %v540
        %v542 = vpop.f32.mrb[0].mxu0
        %v543 = vadd.f32 0.0, %v542
        %544 = vmatprep.mubr.f32.mxu0 0.0
        %545 = vmatmul.mubr.f32.gmra.mrb[0].mxu0 %v451
        %v546 = vpop.f32.mrb[0].mxu0
        %v547 = vadd.f32 0.0, %v546
        %v548 = vpop.f32.mrb[0].mxu0
        %v549 = vadd.f32 0.0, %v548
        %550 = vmatprep.mubr.f32.mxu0 0.0
        %551 = vmatmul.mubr.f32.gmra.mrb[0].mxu0 %v454
        %v552 = vpop.f32.mrb[0].mxu0
        %v553 = vadd.f32 0.0, %v552
        %v554 = vpop.f32.mrb[0].mxu0
        %v555 = vadd.f32 0.0, %v554
        %556 = vmatprep.mubr.f32.mxu0 0.0
        %557 = vmatmul.mubr.f32.gmra.mrb[0].mxu0 %v457
        %v558 = vpop.f32.mrb[0].mxu0
        %v559 = vadd.f32 0.0, %v558
        %v560 = vpop.f32.mrb[0].mxu0
        %v561 = vadd.f32 0.0, %v560
        %562 = vmatprep.mubr.f32.mxu0 0.0
        %563 = vmatmul.mubr.f32.gmra.mrb[0].mxu0 %v460
        %v564 = vpop.f32.mrb[0].mxu0
        %v565 = vadd.f32 0.0, %v564
        %v566 = vpop.f32.mrb[0].mxu0
        %v567 = vadd.f32 0.0, %v566
        %568 = vmatprep.mubr.f32.mxu0 0.0
        %569 = vmatmul.mubr.f32.gmra.mrb[0].mxu0 %v463
        %v570 = vpop.f32.mrb[0].mxu0
        %v571 = vadd.f32 0.0, %v570
        %v572 = vpop.f32.mrb[0].mxu0
        %v573 = vadd.f32 0.0, %v572
        %574 = vmatprep.mubr.f32.mxu0 0.0
        %575 = vmatmul.mubr.f32.gmra.mrb[0].mxu0 %v466
        %v576 = vpop.f32.mrb[0].mxu0
        %v577 = vadd.f32 0.0, %v576
        %v578 = vpop.f32.mrb[0].mxu0
        %v579 = vadd.f32 0.0, %v578
        %580 = vdwg.mxu0
        %581 = vmatprep.subr.mxu0 %v430
        %582 = vmatpush1.msra.mxu0 %v429
        %583 = vmatprep.subr.mxu0 %v434
        %584 = vmatpush1.msra.mxu0 %v433
        %585 = vmatprep.subr.mxu0 0.0
        %586 = vmatpush1.msra.mxu0 0.0
        %587 = vmatprep.subr.mxu0 0.0
        %588 = vmatpush1.msra.mxu0 0.0
        %589 = vmatprep.subr.mxu0 0.0
        %590 = vmatpush1.msra.mxu0 0.0
        %591 = vmatprep.subr.mxu0 0.0
        %592 = vmatpush1.msra.mxu0 0.0
        %593 = vmatprep.subr.mxu0 0.0
        %594 = vmatpush1.msra.mxu0 0.0
        %595 = vmatprep.subr.mxu0 0.0
        %596 = vmatpush1.msra.mxu0 0.0
        %597 = vmatprep.subr.mxu0 0.0
        %598 = vmatpush1.msra.mxu0 0.0
        %599 = vmatprep.subr.mxu0 0.0
        %600 = vmatpush1.msra.mxu0 0.0
        %601 = vmatprep.subr.mxu0 0.0
        %602 = vmatpush1.msra.mxu0 0.0
        %603 = vmatprep.subr.mxu0 0.0
        %604 = vmatpush1.msra.mxu0 0.0
        %605 = vmatprep.subr.mxu0 0.0
        %606 = vmatpush1.msra.mxu0 0.0
        %607 = vmatprep.subr.mxu0 0.0
        %608 = vmatpush1.msra.mxu0 0.0
        %609 = vmatprep.subr.mxu0 0.0
        %610 = vmatpush1.msra.mxu0 0.0
        %611 = vmatprep.subr.mxu0 0.0
        %612 = vmatpush1.msra.mxu0 0.0
        %613 = vmatprep.subr.mxu0 0.0
        %614 = vmatpush1.msra.mxu0 0.0
        %615 = vmatprep.subr.mxu0 0.0
        %616 = vmatpush1.msra.mxu0 0.0
        %617 = vmatprep.subr.mxu0 0.0
        %618 = vmatpush1.msra.mxu0 0.0
        %619 = vmatprep.subr.mxu0 0.0
        %620 = vmatpush1.msra.mxu0 0.0
        %621 = vmatprep.subr.mxu0 0.0
        %622 = vmatpush1.msra.mxu0 0.0
        %623 = vmatprep.subr.mxu0 0.0
        %624 = vmatpush1.msra.mxu0 0.0
        %625 = vmatprep.subr.mxu0 0.0
        %626 = vmatpush1.msra.mxu0 0.0
        %627 = vmatprep.subr.mxu0 0.0
        %628 = vmatpush1.msra.mxu0 0.0
        %629 = vmatprep.subr.mxu0 0.0
        %630 = vmatpush1.msra.mxu0 0.0
        %631 = vmatprep.subr.mxu0 0.0
        %632 = vmatpush1.msra.mxu0 0.0
        %633 = vmatprep.subr.mxu0 0.0
        %634 = vmatpush1.msra.mxu0 0.0
        %635 = vmatprep.subr.mxu0 0.0
        %636 = vmatpush1.msra.mxu0 0.0
        %637 = vmatprep.subr.mxu0 0.0
        %638 = vmatpush1.msra.mxu0 0.0
        %639 = vmatprep.subr.mxu0 0.0
        %640 = vmatpush1.msra.mxu0 0.0
        %641 = vmatprep.subr.mxu0 0.0
        %642 = vmatpush1.msra.mxu0 0.0
        %643 = vmatprep.subr.mxu0 0.0
        %644 = vmatpush1.msra.mxu0 0.0
        %645 = vmatprep.mubr.f32.mxu0 0.0
        %646 = vmatmul.mubr.f32.gmra.mrb[0].mxu0 %v445
        %v647 = vpop.f32.mrb[0].mxu0
        %v648 = vadd.f32 0.0, %v647
        %v649 = vpop.f32.mrb[0].mxu0
        %v650 = vadd.f32 0.0, %v649
        %651 = vmatprep.mubr.f32.mxu0 0.0
        %652 = vmatmul.mubr.f32.gmra.mrb[0].mxu0 %v448
        %v653 = vpop.f32.mrb[0].mxu0
        %v654 = vadd.f32 0.0, %v653
        %v655 = vpop.f32.mrb[0].mxu0
        %v656 = vadd.f32 0.0, %v655
        %657 = vmatprep.mubr.f32.mxu0 0.0
        %658 = vmatmul.mubr.f32.gmra.mrb[0].mxu0 %v451
        %v659 = vpop.f32.mrb[0].mxu0
        %v660 = vadd.f32 0.0, %v659
        %v661 = vpop.f32.mrb[0].mxu0
        %v662 = vadd.f32 0.0, %v661
        %663 = vmatprep.mubr.f32.mxu0 0.0
        %664 = vmatmul.mubr.f32.gmra.mrb[0].mxu0 %v454
        %v665 = vpop.f32.mrb[0].mxu0
        %v666 = vadd.f32 0.0, %v665
        %v667 = vpop.f32.mrb[0].mxu0
        %v668 = vadd.f32 0.0, %v667
        %669 = vmatprep.mubr.f32.mxu0 0.0
        %670 = vmatmul.mubr.f32.gmra.mrb[0].mxu0 %v457
        %v671 = vpop.f32.mrb[0].mxu0
        %v672 = vadd.f32 0.0, %v671
        %v673 = vpop.f32.mrb[0].mxu0
        %v674 = vadd.f32 0.0, %v673
        %675 = vmatprep.mubr.f32.mxu0 0.0
        %676 = vmatmul.mubr.f32.gmra.mrb[0].mxu0 %v460
        %v677 = vpop.f32.mrb[0].mxu0
        %v678 = vadd.f32 0.0, %v677
        %v679 = vpop.f32.mrb[0].mxu0
        %v680 = vadd.f32 0.0, %v679
        %681 = vmatprep.mubr.f32.mxu0 0.0
        %682 = vmatmul.mubr.f32.gmra.mrb[0].mxu0 %v463
        %v683 = vpop.f32.mrb[0].mxu0
        %v684 = vadd.f32 0.0, %v683
        %v685 = vpop.f32.mrb[0].mxu0
        %v686 = vadd.f32 0.0, %v685
        %687 = vmatprep.mubr.f32.mxu0 0.0
        %688 = vmatmul.mubr.f32.gmra.mrb[0].mxu0 %v466
        %v689 = vpop.f32.mrb[0].mxu0
        %v690 = vadd.f32 0.0, %v689
        %v691 = vpop.f32.mrb[0].mxu0
        %v692 = vadd.f32 0.0, %v691
        %693 = vdwg.mxu0
        %694 = vst [vmem:[%s252] sm:$0xff] %v535
        %695 = vst [vmem:[%s252 + $0x8] sm:$0xff] %v537
        %696 = vst [vmem:[%s252 + $0x10] sm:$0xff] %v648
        %697 = vst [vmem:[%s252 + $0x18] sm:$0xff] %v650
        %698 = vst [vmem:[%s252 + $0x20] sm:$0xff] %v541
        %699 = vst [vmem:[%s252 + $0x28] sm:$0xff] %v543
        %700 = vst [vmem:[%s252 + $0x30] sm:$0xff] %v654
        %701 = vst [vmem:[%s252 + $0x38] sm:$0xff] %v656
        %702 = vst [vmem:[%s252 + $0x40] sm:$0xff] %v547
        %703 = vst [vmem:[%s252 + $0x48] sm:$0xff] %v549
        %704 = vst [vmem:[%s252 + $0x50] sm:$0xff] %v660
        %705 = vst [vmem:[%s252 + $0x58] sm:$0xff] %v662
        %706 = vst [vmem:[%s252 + $0x60] sm:$0xff] %v553
        %707 = vst [vmem:[%s252 + $0x68] sm:$0xff] %v555
        %708 = vst [vmem:[%s252 + $0x70] sm:$0xff] %v666
        %709 = vst [vmem:[%s252 + $0x78] sm:$0xff] %v668
        %710 = vst [vmem:[%s252 + $0x80] sm:$0xff] %v559
        %711 = vst [vmem:[%s252 + $0x88] sm:$0xff] %v561
        %712 = vst [vmem:[%s252 + $0x90] sm:$0xff] %v672
        %713 = vst [vmem:[%s252 + $0x98] sm:$0xff] %v674
        %714 = vst [vmem:[%s252 + $0xa0] sm:$0xff] %v565
        %715 = vst [vmem:[%s252 + $0xa8] sm:$0xff] %v567
        %716 = vst [vmem:[%s252 + $0xb0] sm:$0xff] %v678
        %717 = vst [vmem:[%s252 + $0xb8] sm:$0xff] %v680
        %718 = vst [vmem:[%s252 + $0xc0] sm:$0xff] %v571
        %719 = vst [vmem:[%s252 + $0xc8] sm:$0xff] %v573
        %720 = vst [vmem:[%s252 + $0xd0] sm:$0xff] %v684
        %721 = vst [vmem:[%s252 + $0xd8] sm:$0xff] %v686
        %722 = vst [vmem:[%s252 + $0xe0] sm:$0xff] %v577
        %723 = vst [vmem:[%s252 + $0xe8] sm:$0xff] %v579
        %724 = vst [vmem:[%s252 + $0xf0] sm:$0xff] %v690
        %725 = vst [vmem:[%s252 + $0xf8] sm:$0xff] %v692
        %s726 = sand.u32 %s134, 1
        %s727 = sand.u32 %s134, 1
        %s728 = smul.addr %s727, 256
        %s729 = scalar_lea.vmem [#allocation5], %s728
        // Predicated region
        $region68: #{bn_add_conv1x1.1} parent=58 // pred_check
          %p730 = pneg %p144
        $region69: #{bn_add_conv1x1.1} parent=58 // pred_check_branch
          %732 = sbr.rel (%p730) target = $region71
        $region70: #{bn_add_conv1x1.1} parent=58 // pred_region
          %s733 = smul.u32 4, %s16
          %s734 = smul.addr %s733, 8
          %s735 = scalar_lea.vmem %s5, %s734
          // Predicated region
          $region72: #{bn_add_conv1x1.1} parent=70 // pred_check
            _
          $region73: #{bn_add_conv1x1.1} parent=70 // pred_check_branch
            %737 = sbr.rel (0) target = $region75
          $region74: #{bn_add_conv1x1.1} parent=70 // pred_region
            // Predicated region
            $region76: #{bn_add_conv1x1.1} parent=74 // pred_check
              _
            $region77: #{bn_add_conv1x1.1} parent=74 // pred_check_branch
              %739 = sbr.rel (0) target = $region79
            $region78: #{bn_add_conv1x1.1} parent=74 // pred_region
              loop: start=0, step=1, limit=1
              $region80: #{bn_add_conv1x1.1} parent=78 // loop_pre_header
                _
              $region81: #{bn_add_conv1x1.1} parent=78 // loop_header
                %s741 = sphi 0, %s745
                %p742 = scmp.ge.s32.totalorder %s741, 1
                %s746 = sphi %s729, %s729
                %s747 = sphi %s735, %s735
              $region82: #{bn_add_conv1x1.1} parent=78 // loop_header_branch
                %744 = sbr.rel (%p742) target = $region86
              $region83: #{bn_add_conv1x1.1} parent=78 // loop_body
                %v748 = vld [vmem:[%s746] sm:$0xff]
                %749 = vst [vmem:[%s747] sm:$0xff] %v748
                %v750 = vld [vmem:[%s746 + $0x8] sm:$0xff]
                %751 = vst [vmem:[%s747 + $0x8] sm:$0xff] %v750
                %v752 = vld [vmem:[%s746 + $0x10] sm:$0xff]
                %753 = vst [vmem:[%s747 + $0x10] sm:$0xff] %v752
                %v754 = vld [vmem:[%s746 + $0x18] sm:$0xff]
                %755 = vst [vmem:[%s747 + $0x18] sm:$0xff] %v754
                %v756 = vld [vmem:[%s746 + $0x20] sm:$0xff]
                %757 = vst [vmem:[%s747 + $0x40] sm:$0xff] %v756
                %v758 = vld [vmem:[%s746 + $0x28] sm:$0xff]
                %759 = vst [vmem:[%s747 + $0x48] sm:$0xff] %v758
                %v760 = vld [vmem:[%s746 + $0x30] sm:$0xff]
                %761 = vst [vmem:[%s747 + $0x50] sm:$0xff] %v760
                %v762 = vld [vmem:[%s746 + $0x38] sm:$0xff]
                %763 = vst [vmem:[%s747 + $0x58] sm:$0xff] %v762
                %v764 = vld [vmem:[%s746 + $0x40] sm:$0xff]
                %765 = vst [vmem:[%s747 + $0x80] sm:$0xff] %v764
                %v766 = vld [vmem:[%s746 + $0x48] sm:$0xff]
                %767 = vst [vmem:[%s747 + $0x88] sm:$0xff] %v766
                %v768 = vld [vmem:[%s746 + $0x50] sm:$0xff]
                %769 = vst [vmem:[%s747 + $0x90] sm:$0xff] %v768
                %v770 = vld [vmem:[%s746 + $0x58] sm:$0xff]
                %771 = vst [vmem:[%s747 + $0x98] sm:$0xff] %v770
                %v772 = vld [vmem:[%s746 + $0x60] sm:$0xff]
                %773 = vst [vmem:[%s747 + $0xc0] sm:$0xff] %v772
                %v774 = vld [vmem:[%s746 + $0x68] sm:$0xff]
                %775 = vst [vmem:[%s747 + $0xc8] sm:$0xff] %v774
                %v776 = vld [vmem:[%s746 + $0x70] sm:$0xff]
                %777 = vst [vmem:[%s747 + $0xd0] sm:$0xff] %v776
                %v778 = vld [vmem:[%s746 + $0x78] sm:$0xff]
                %779 = vst [vmem:[%s747 + $0xd8] sm:$0xff] %v778
                %v780 = vld [vmem:[%s746 + $0x80] sm:$0xff]
                %781 = vst [vmem:[%s747 + $0x100] sm:$0xff] %v780
                %v782 = vld [vmem:[%s746 + $0x88] sm:$0xff]
                %783 = vst [vmem:[%s747 + $0x108] sm:$0xff] %v782
                %v784 = vld [vmem:[%s746 + $0x90] sm:$0xff]
                %785 = vst [vmem:[%s747 + $0x110] sm:$0xff] %v784
                %v786 = vld [vmem:[%s746 + $0x98] sm:$0xff]
                %787 = vst [vmem:[%s747 + $0x118] sm:$0xff] %v786
                %v788 = vld [vmem:[%s746 + $0xa0] sm:$0xff]
                %789 = vst [vmem:[%s747 + $0x140] sm:$0xff] %v788
                %v790 = vld [vmem:[%s746 + $0xa8] sm:$0xff]
                %791 = vst [vmem:[%s747 + $0x148] sm:$0xff] %v790
                %v792 = vld [vmem:[%s746 + $0xb0] sm:$0xff]
                %793 = vst [vmem:[%s747 + $0x150] sm:$0xff] %v792
                %v794 = vld [vmem:[%s746 + $0xb8] sm:$0xff]
                %795 = vst [vmem:[%s747 + $0x158] sm:$0xff] %v794
                %v796 = vld [vmem:[%s746 + $0xc0] sm:$0xff]
                %797 = vst [vmem:[%s747 + $0x180] sm:$0xff] %v796
                %v798 = vld [vmem:[%s746 + $0xc8] sm:$0xff]
                %799 = vst [vmem:[%s747 + $0x188] sm:$0xff] %v798
                %v800 = vld [vmem:[%s746 + $0xd0] sm:$0xff]
                %801 = vst [vmem:[%s747 + $0x190] sm:$0xff] %v800
                %v802 = vld [vmem:[%s746 + $0xd8] sm:$0xff]
                %803 = vst [vmem:[%s747 + $0x198] sm:$0xff] %v802
                %v804 = vld [vmem:[%s746 + $0xe0] sm:$0xff]
                %805 = vst [vmem:[%s747 + $0x1c0] sm:$0xff] %v804
                %v806 = vld [vmem:[%s746 + $0xe8] sm:$0xff]
                %807 = vst [vmem:[%s747 + $0x1c8] sm:$0xff] %v806
                %v808 = vld [vmem:[%s746 + $0xf0] sm:$0xff]
                %809 = vst [vmem:[%s747 + $0x1d0] sm:$0xff] %v808
                %v810 = vld [vmem:[%s746 + $0xf8] sm:$0xff]
                %811 = vst [vmem:[%s747 + $0x1d8] sm:$0xff] %v810
              $region84: #{bn_add_conv1x1.1} parent=78 // loop_footer
                %s745 = sadd.s32 1, %s741
              $region85: #{bn_add_conv1x1.1} parent=78 // loop_footer_branch
                %740 = sbr.rel target = $region81
              $region86: #{bn_add_conv1x1.1} parent=78 // loop_exit
                _
            $region79: #{bn_add_conv1x1.1} parent=74 // pred_fallthru
              _
            // Predicated region
            $region87: #{bn_add_conv1x1.1} parent=74 // pred_check
              _
            $region88: #{bn_add_conv1x1.1} parent=74 // pred_check_branch
              %813 = sbr.rel target = $region90
            $region89: #{bn_add_conv1x1.1} parent=74 // pred_region
              _
            $region90: #{bn_add_conv1x1.1} parent=74 // pred_fallthru
              _
          $region75: #{bn_add_conv1x1.1} parent=70 // pred_fallthru
            _
          %814 = vnop
        $region71: #{bn_add_conv1x1.1} parent=58 // pred_fallthru
          _
      $region59: #{bn_add_conv1x1.1} parent=5 // pred_fallthru
        _
      %p815 = scmp.le.s32.totalorder 2, %s11
      // Predicated region
      $region91: #{bn_add_conv1x1.1} parent=5 // pred_check
        %p816 = pneg %p815
      $region92: #{bn_add_conv1x1.1} parent=5 // pred_check_branch
        %818 = sbr.rel (%p816) target = $region94
      $region93: #{bn_add_conv1x1.1} parent=5 // pred_region
        %s819 = ssub.s32 %s11, 2
        // Predicated region
        $region95: #{bn_add_conv1x1.1} parent=93 // pred_check
          %p820 = pneg %p150
        $region96: #{bn_add_conv1x1.1} parent=93 // pred_check_branch
          %822 = sbr.rel (%p820) target = $region98
        $region97: #{bn_add_conv1x1.1} parent=93 // pred_region
          %s823 = sand.u32 %s135, 1
          %s824 = sand.u32 %s135, 1
          %s825 = smul.addr %s824, 256
          %s826 = scalar_lea.vmem [#allocation5], %s825
        $region98: #{bn_add_conv1x1.1} parent=93 // pred_fallthru
          _
      $region94: #{bn_add_conv1x1.1} parent=5 // pred_fallthru
        _
    $region6: #{bn_add_conv1x1.1} parent=1 // loop_footer
      %s15 = sadd.s32 1, %s11
    $region7: #{bn_add_conv1x1.1} parent=1 // loop_footer_branch
      %10 = sbr.rel target = $region3
    $region8: #{bn_add_conv1x1.1} parent=1 // loop_exit
      _

</llo_original>
